<compile_context>
chip_gen: v6e
topology: v6e:2x2x1
jax: 0.10.0
libtpu: 0.0.40
codegen_flags: <defaults>
</compile_context>

<pallas_src>
import jax
import jax.numpy as jnp
from jax import lax
from jax.experimental import pallas as pl
from jax.experimental.pallas import tpu as pltpu


def _decoder_kernel(h0_ref, c0_ref, wcomb_ref, bcomb_ref, wdp_ref, bdp_ref,
                    out_ref, hbuf_ref):
    """Full decode loop for one batch tile.

    h0/c0:   [Bt, L]       f32 initial LSTM state (batch tile)
    wcomb:   [L, 4L]       folded gate weights (gate order i, f, g, o)
    bcomb:   [1, 4L]       folded gate bias (f32)
    wdp:     [L, F_pad]    lane-padded dense readout weights
    bdp:     [1, F_pad]    lane-padded dense readout bias (f32)
    out:     [T, Bt, F_pad] f32, time-major, lane-dense last dim
    hbuf:    [T, Bt, L]    f32 VMEM scratch holding all hidden states
    """
    T, Bt, F_pad = out_ref.shape
    L = h0_ref.shape[-1]
    mm_dtype = wcomb_ref.dtype

    # Loop-invariant weight loads hoisted out of the time loop.  Biases stay
    # [1, N]; the add broadcasts implicitly (no broadcast_to -> fewer vregs
    # held live across the unrolled loop).
    w_comb = wcomb_ref[...]                 # [L, 4L]
    b_comb = bcomb_ref[...]                 # [1, 4L]

    def step(t, carry):
        h, c = carry
        # Single MXU matmul on the serial critical path (f32 accumulation).
        gates = jnp.dot(h.astype(mm_dtype), w_comb,
                        preferred_element_type=jnp.float32) + b_comb
        # Full-width EUP passes, then static lane slices (torch order i,f,g,o).
        sig = jax.nn.sigmoid(gates)
        tnh = jnp.tanh(gates)
        i_g = sig[:, 0 * L:1 * L]
        f_g = sig[:, 1 * L:2 * L]
        g_g = tnh[:, 2 * L:3 * L]
        o_g = sig[:, 3 * L:4 * L]
        c_new = f_g * c + i_g * g_g
        h_new = o_g * jnp.tanh(c_new)
        # Only the tiny [Bt, L] hidden state is stored per step; the dense
        # readout is deferred to one batched matmul after the loop.
        hbuf_ref[t] = h_new
        return (h_new, c_new)

    # Bounded unroll: full unroll for short sequences, unroll=8 otherwise.
    lax.fori_loop(0, T, step, (h0_ref[...], c0_ref[...]),
                  unroll=(T if T <= 8 else 8))

    # Deferred batched readout: one [T*Bt, L] x [L, F_pad] MXU matmul, bias
    # added once, lane-dense resident output written back in one shot.
    # (Bt is a multiple of 8, so both reshapes are layout no-ops.)
    h_all = hbuf_ref[...].reshape(T * Bt, L)
    x_all = jnp.dot(h_all.astype(mm_dtype), wdp_ref[...],
                    preferred_element_type=jnp.float32) + bdp_ref[...]
    out_ref[...] = x_all.reshape(T, Bt, F_pad)


def recurrent_decoder_lstm(h_0, params, seq_len, *, matmul_dtype=jnp.float32,
                           batch_block=None):
    """Pallas implementation of RecurrentDecoderLSTM.forward.

    h_0: tuple (h, c), each [1, B, L].  Returns [B, seq_len, F] float32.
    matmul_dtype: jnp.float32 (exact) or jnp.bfloat16 (fast MXU path).
    batch_block: batch tile size (multiple of 8) for the parallel grid axis
                 (useful on v7x to spread the batch over both TensorCores).
    """
    h0 = jnp.squeeze(h_0[0], axis=0).astype(jnp.float32)    # [B, L]
    c0 = jnp.squeeze(h_0[1], axis=0).astype(jnp.float32)    # [B, L]
    B, L = h0.shape
    F = params["w_dense"].shape[0]
    F_pad = ((F + 127) // 128) * 128
    B_pad = ((B + 7) // 8) * 8

    # Sublane-pad the batch so every block / reshape is (8,128)-friendly.
    if B_pad != B:
        h0 = jnp.pad(h0, ((0, B_pad - B), (0, 0)))
        c0 = jnp.pad(c0, ((0, B_pad - B), (0, 0)))

    # Batch tile size for the parallel grid axis.
    if batch_block is None:
        batch_block = B_pad
    batch_block = max(8, min(int(batch_block), B_pad))
    batch_block -= batch_block % 8
    if B_pad % batch_block != 0:
        batch_block = B_pad
    n_tiles = B_pad // batch_block

    w_ih_t = params["w_ih"].T.astype(jnp.float32)      # [F, 4L]
    w_hh_t = params["w_hh"].T.astype(jnp.float32)      # [L, 4L]
    w_d_t = params["w_dense"].T.astype(jnp.float32)    # [L, F]

    # Fold the dense readout into the next step's gate matmul:
    #   gates_t = h_{t-1} @ (W_d^T W_ih^T + W_hh^T) + (b_d W_ih^T + b_ih + b_hh)
    w_comb = (w_d_t @ w_ih_t + w_hh_t).astype(matmul_dtype)              # [L, 4L]
    b_comb = (params["b_dense"] @ w_ih_t + params["b_ih"]
              + params["b_hh"]).astype(jnp.float32)[None, :]             # [1, 4L]

    # Lane-padded readout weights / bias (unmasked lane-dense output stores).
    w_dp = jnp.zeros((L, F_pad), jnp.float32).at[:, :F].set(w_d_t)
    w_dp = w_dp.astype(matmul_dtype)                                     # [L, F_pad]
    b_dp = jnp.zeros((1, F_pad), jnp.float32).at[:, :F].set(
        params["b_dense"].astype(jnp.float32)[None, :])                  # [1, F_pad]

    four_l = 4 * L
    grid_spec = pltpu.PrefetchScalarGridSpec(
        num_scalar_prefetch=0,
        grid=(n_tiles,),
        in_specs=[
            pl.BlockSpec((batch_block, L), lambda b: (b, 0)),        # h0
            pl.BlockSpec((batch_block, L), lambda b: (b, 0)),        # c0
            pl.BlockSpec((L, four_l), lambda b: (0, 0)),             # w_comb
            pl.BlockSpec((1, four_l), lambda b: (0, 0)),             # b_comb
            pl.BlockSpec((L, F_pad), lambda b: (0, 0)),              # w_dp
            pl.BlockSpec((1, F_pad), lambda b: (0, 0)),              # b_dp
        ],
        out_specs=pl.BlockSpec((seq_len, batch_block, F_pad),
                               lambda b: (0, b, 0)),
        scratch_shapes=[pltpu.VMEM((seq_len, batch_block, L), jnp.float32)],
    )

    out_tbp = pl.pallas_call(
        _decoder_kernel,
        out_shape=jax.ShapeDtypeStruct((seq_len, B_pad, F_pad), jnp.float32),
        grid_spec=grid_spec,
        compiler_params=pltpu.CompilerParams(
            dimension_semantics=("parallel",)),   # batch tiles are independent
    )(h0, c0, w_comb, b_comb, w_dp, b_dp)

    # Layout plumbing back to the PyTorch result layout [B, seq_len, F].
    return jnp.transpose(out_tbp[:, :B, :F], (1, 0, 2))


def reference_decoder(h_0, params, seq_len):
    """Pure-JAX reference mirroring the PyTorch forward exactly (f32)."""
    h = jnp.squeeze(h_0[0], axis=0)
    c = jnp.squeeze(h_0[1], axis=0)
    L = h.shape[-1]
    dense = lambda z: z @ params["w_dense"].T + params["b_dense"]
    x_i = dense(h)
    outs = []
    for _ in range(seq_len):
        gates = (x_i @ params["w_ih"].T + params["b_ih"]
                 + h @ params["w_hh"].T + params["b_hh"])
        i_g = jax.nn.sigmoid(gates[:, 0 * L:1 * L])
        f_g = jax.nn.sigmoid(gates[:, 1 * L:2 * L])
        g_g = jnp.tanh(gates[:, 2 * L:3 * L])
        o_g = jax.nn.sigmoid(gates[:, 3 * L:4 * L])
        c = f_g * c + i_g * g_g
        h = o_g * jnp.tanh(c)
        x_i = dense(h)
        outs.append(x_i)
    x = jnp.concatenate(outs, axis=1)
    return x.reshape(-1, seq_len, params["w_dense"].shape[0])


def init_params(key, n_features, latent_dim):
    """Deterministic init matching torch LSTMCell / Linear parameter shapes."""
    ks = jax.random.split(key, 6)
    k = 1.0 / jnp.sqrt(latent_dim)
    u = lambda kk, shape: jax.random.uniform(kk, shape, jnp.float32, -k, k)
    return {
        "w_ih": u(ks[0], (4 * latent_dim, n_features)),
        "w_hh": u(ks[1], (4 * latent_dim, latent_dim)),
        "b_ih": u(ks[2], (4 * latent_dim,)),
        "b_hh": u(ks[3], (4 * latent_dim,)),
        "w_dense": u(ks[4], (n_features, latent_dim)),
        "b_dense": u(ks[5], (n_features,)),
    }


if __name__ == "__main__":
    B, L, F, T = 8, 32, 16, 8   # batch, latent_dim, n_features, seq_len

    key = jax.random.PRNGKey(0)
    kp, kh, kc = jax.random.split(key, 3)
    params = init_params(kp, n_features=F, latent_dim=L)
    h0 = jax.random.normal(kh, (1, B, L), jnp.float32)
    c0 = jax.random.normal(kc, (1, B, L), jnp.float32)

    ref = reference_decoder((h0, c0), params, T)

    # f32 MXU operands: tight accuracy check (folding only perturbs rounding).
    out_f32 = jax.block_until_ready(
        recurrent_decoder_lstm((h0, c0), params, T, matmul_dtype=jnp.float32))
    assert out_f32.shape == (B, T, F), out_f32.shape
    assert jnp.allclose(out_f32, ref, atol=1e-4, rtol=1e-4), \
        float(jnp.max(jnp.abs(out_f32 - ref)))

    # bf16 MXU operands (fast path): loose sanity check vs f32 reference.
    out_bf16 = jax.block_until_ready(
        recurrent_decoder_lstm((h0, c0), params, T, matmul_dtype=jnp.bfloat16))
    assert out_bf16.shape == (B, T, F), out_bf16.shape
    assert jnp.allclose(out_bf16, ref, atol=1e-1, rtol=1e-1), \
        float(jnp.max(jnp.abs(out_bf16 - ref)))

    # Batch-tiled path (grid=(2,), "parallel" -> both v7x TensorCores usable).
    B2 = 16
    kh2, kc2 = jax.random.split(jax.random.PRNGKey(1), 2)
    h0b = jax.random.normal(kh2, (1, B2, L), jnp.float32)
    c0b = jax.random.normal(kc2, (1, B2, L), jnp.float32)
    ref2 = reference_decoder((h0b, c0b), params, T)
    out2 = jax.block_until_ready(
        recurrent_decoder_lstm((h0b, c0b), params, T, batch_block=8))
    assert out2.shape == (B2, T, F), out2.shape
    assert jnp.allclose(out2, ref2, atol=1e-4, rtol=1e-4), \
        float(jnp.max(jnp.abs(out2 - ref2)))

    print("KERNEL_OK")
</pallas_src>

<mosaic_0001>
module attributes {stable_mosaic.version = 11 : i64} {
  func.func @_decoder_kernel(%arg0: i32, %arg1: memref<8x32xf32, #tpu.memory_space<vmem>>, %arg2: memref<8x32xf32, #tpu.memory_space<vmem>>, %arg3: memref<32x128xf32, #tpu.memory_space<vmem>>, %arg4: memref<1x128xf32, #tpu.memory_space<vmem>>, %arg5: memref<32x128xf32, #tpu.memory_space<vmem>>, %arg6: memref<1x128xf32, #tpu.memory_space<vmem>>, %arg7: memref<8x8x128xf32, #tpu.memory_space<vmem>>, %arg8: memref<8x8x32xf32, #tpu.memory_space<vmem>>) attributes {dimension_semantics = [#tpu.dimension_semantics<parallel>], iteration_bounds = array<i64: 1>, scalar_prefetch = 0 : i64, scratch_operands = 1 : i64, tpu.core_type = #tpu.core_type<tc>, window_params = [{transform_indices = @transform_0, window_bounds = array<i64: 8, 32>}, {transform_indices = @transform_1, window_bounds = array<i64: 8, 32>}, {pipeline_mode = #tpu.pipeline_mode<synchronous>, transform_indices = @transform_2, window_bounds = array<i64: 32, 128>}, {pipeline_mode = #tpu.pipeline_mode<synchronous>, transform_indices = @transform_3, window_bounds = array<i64: 1, 128>}, {pipeline_mode = #tpu.pipeline_mode<synchronous>, transform_indices = @transform_4, window_bounds = array<i64: 32, 128>}, {pipeline_mode = #tpu.pipeline_mode<synchronous>, transform_indices = @transform_5, window_bounds = array<i64: 1, 128>}, {transform_indices = @transform_6, window_bounds = array<i64: 8, 8, 128>}]} {
    %c0 = arith.constant 0 : index
    %c0_0 = arith.constant 0 : index
    %0 = vector.load %arg3[%c0, %c0_0] : memref<32x128xf32, #tpu.memory_space<vmem>>, vector<32x128xf32>
    %c0_1 = arith.constant 0 : index
    %c0_2 = arith.constant 0 : index
    %1 = vector.load %arg4[%c0_1, %c0_2] : memref<1x128xf32, #tpu.memory_space<vmem>>, vector<1x128xf32>
    %c0_3 = arith.constant 0 : index
    %c0_4 = arith.constant 0 : index
    %2 = vector.load %arg1[%c0_3, %c0_4] : memref<8x32xf32, #tpu.memory_space<vmem>>, vector<8x32xf32>
    %c0_5 = arith.constant 0 : index
    %c0_6 = arith.constant 0 : index
    %3 = vector.load %arg2[%c0_5, %c0_6] : memref<8x32xf32, #tpu.memory_space<vmem>>, vector<8x32xf32>
    %c0_i32 = arith.constant 0 : i32
    %cst = arith.constant dense<0.000000e+00> : vector<8x128xf32>
    %4 = tpu.matmul %2, %0, %cst {dimension_numbers = #tpu.dot_dimension_numbers<[1], [0], [0], [1], [0, 0, 1, 1], [], []>} : vector<8x32xf32>, vector<32x128xf32>, vector<8x128xf32> -> vector<8x128xf32>
    %5 = vector.broadcast %1 : vector<1x128xf32> to vector<8x128xf32>
    %6 = arith.addf %4, %5 : vector<8x128xf32>
    %7 = arith.negf %6 : vector<8x128xf32>
    %8 = math.exp %7 : vector<8x128xf32>
    %cst_7 = arith.constant 1.000000e+00 : f32
    %9 = vector.broadcast %cst_7 : f32 to vector<8x128xf32>
    %10 = arith.addf %9, %8 : vector<8x128xf32>
    %11 = arith.divf %9, %10 : vector<8x128xf32>
    %12 = math.tanh %6 : vector<8x128xf32>
    %13 = vector.extract_strided_slice %11 {offsets = [0, 0], sizes = [8, 32], strides = [1, 1]} : vector<8x128xf32> to vector<8x32xf32>
    %14 = vector.extract_strided_slice %11 {offsets = [0, 32], sizes = [8, 32], strides = [1, 1]} : vector<8x128xf32> to vector<8x32xf32>
    %15 = vector.extract_strided_slice %12 {offsets = [0, 64], sizes = [8, 32], strides = [1, 1]} : vector<8x128xf32> to vector<8x32xf32>
    %16 = vector.extract_strided_slice %11 {offsets = [0, 96], sizes = [8, 32], strides = [1, 1]} : vector<8x128xf32> to vector<8x32xf32>
    %17 = arith.mulf %14, %3 : vector<8x32xf32>
    %18 = arith.mulf %13, %15 : vector<8x32xf32>
    %19 = arith.addf %17, %18 : vector<8x32xf32>
    %20 = math.tanh %19 : vector<8x32xf32>
    %21 = arith.mulf %16, %20 : vector<8x32xf32>
    %22 = arith.index_cast %c0_i32 : i32 to index
    %c0_8 = arith.constant 0 : index
    %c0_9 = arith.constant 0 : index
    %23 = vector.load %arg8[%22, %c0_8, %c0_9] : memref<8x8x32xf32, #tpu.memory_space<vmem>>, vector<1x8x32xf32>
    %24 = vector.shape_cast %23 : vector<1x8x32xf32> to vector<8x32xf32>
    %25 = vector.shape_cast %21 : vector<8x32xf32> to vector<1x8x32xf32>
    tpu.vector_store %arg8[%22, %c0_8, %c0_9], %25 {strides = array<i32>} : memref<8x8x32xf32, #tpu.memory_space<vmem>>, vector<1x8x32xf32>,
    %c1_i32 = arith.constant 1 : i32
    %cst_10 = arith.constant dense<0.000000e+00> : vector<8x128xf32>
    %26 = tpu.matmul %21, %0, %cst_10 {dimension_numbers = #tpu.dot_dimension_numbers<[1], [0], [0], [1], [0, 0, 1, 1], [], []>} : vector<8x32xf32>, vector<32x128xf32>, vector<8x128xf32> -> vector<8x128xf32>
    %27 = vector.broadcast %1 : vector<1x128xf32> to vector<8x128xf32>
    %28 = arith.addf %26, %27 : vector<8x128xf32>
    %29 = arith.negf %28 : vector<8x128xf32>
    %30 = math.exp %29 : vector<8x128xf32>
    %cst_11 = arith.constant 1.000000e+00 : f32
    %31 = vector.broadcast %cst_11 : f32 to vector<8x128xf32>
    %32 = arith.addf %31, %30 : vector<8x128xf32>
    %33 = arith.divf %31, %32 : vector<8x128xf32>
    %34 = math.tanh %28 : vector<8x128xf32>
    %35 = vector.extract_strided_slice %33 {offsets = [0, 0], sizes = [8, 32], strides = [1, 1]} : vector<8x128xf32> to vector<8x32xf32>
    %36 = vector.extract_strided_slice %33 {offsets = [0, 32], sizes = [8, 32], strides = [1, 1]} : vector<8x128xf32> to vector<8x32xf32>
    %37 = vector.extract_strided_slice %34 {offsets = [0, 64], sizes = [8, 32], strides = [1, 1]} : vector<8x128xf32> to vector<8x32xf32>
    %38 = vector.extract_strided_slice %33 {offsets = [0, 96], sizes = [8, 32], strides = [1, 1]} : vector<8x128xf32> to vector<8x32xf32>
    %39 = arith.mulf %36, %19 : vector<8x32xf32>
    %40 = arith.mulf %35, %37 : vector<8x32xf32>
    %41 = arith.addf %39, %40 : vector<8x32xf32>
    %42 = math.tanh %41 : vector<8x32xf32>
    %43 = arith.mulf %38, %42 : vector<8x32xf32>
    %44 = arith.index_cast %c1_i32 : i32 to index
    %c0_12 = arith.constant 0 : index
    %c0_13 = arith.constant 0 : index
    %45 = vector.load %arg8[%44, %c0_12, %c0_13] : memref<8x8x32xf32, #tpu.memory_space<vmem>>, vector<1x8x32xf32>
    %46 = vector.shape_cast %45 : vector<1x8x32xf32> to vector<8x32xf32>
    %47 = vector.shape_cast %43 : vector<8x32xf32> to vector<1x8x32xf32>
    tpu.vector_store %arg8[%44, %c0_12, %c0_13], %47 {strides = array<i32>} : memref<8x8x32xf32, #tpu.memory_space<vmem>>, vector<1x8x32xf32>,
    %c2_i32 = arith.constant 2 : i32
    %cst_14 = arith.constant dense<0.000000e+00> : vector<8x128xf32>
    %48 = tpu.matmul %43, %0, %cst_14 {dimension_numbers = #tpu.dot_dimension_numbers<[1], [0], [0], [1], [0, 0, 1, 1], [], []>} : vector<8x32xf32>, vector<32x128xf32>, vector<8x128xf32> -> vector<8x128xf32>
    %49 = vector.broadcast %1 : vector<1x128xf32> to vector<8x128xf32>
    %50 = arith.addf %48, %49 : vector<8x128xf32>
    %51 = arith.negf %50 : vector<8x128xf32>
    %52 = math.exp %51 : vector<8x128xf32>
    %cst_15 = arith.constant 1.000000e+00 : f32
    %53 = vector.broadcast %cst_15 : f32 to vector<8x128xf32>
    %54 = arith.addf %53, %52 : vector<8x128xf32>
    %55 = arith.divf %53, %54 : vector<8x128xf32>
    %56 = math.tanh %50 : vector<8x128xf32>
    %57 = vector.extract_strided_slice %55 {offsets = [0, 0], sizes = [8, 32], strides = [1, 1]} : vector<8x128xf32> to vector<8x32xf32>
    %58 = vector.extract_strided_slice %55 {offsets = [0, 32], sizes = [8, 32], strides = [1, 1]} : vector<8x128xf32> to vector<8x32xf32>
    %59 = vector.extract_strided_slice %56 {offsets = [0, 64], sizes = [8, 32], strides = [1, 1]} : vector<8x128xf32> to vector<8x32xf32>
    %60 = vector.extract_strided_slice %55 {offsets = [0, 96], sizes = [8, 32], strides = [1, 1]} : vector<8x128xf32> to vector<8x32xf32>
    %61 = arith.mulf %58, %41 : vector<8x32xf32>
    %62 = arith.mulf %57, %59 : vector<8x32xf32>
    %63 = arith.addf %61, %62 : vector<8x32xf32>
    %64 = math.tanh %63 : vector<8x32xf32>
    %65 = arith.mulf %60, %64 : vector<8x32xf32>
    %66 = arith.index_cast %c2_i32 : i32 to index
    %c0_16 = arith.constant 0 : index
    %c0_17 = arith.constant 0 : index
    %67 = vector.load %arg8[%66, %c0_16, %c0_17] : memref<8x8x32xf32, #tpu.memory_space<vmem>>, vector<1x8x32xf32>
    %68 = vector.shape_cast %67 : vector<1x8x32xf32> to vector<8x32xf32>
    %69 = vector.shape_cast %65 : vector<8x32xf32> to vector<1x8x32xf32>
    tpu.vector_store %arg8[%66, %c0_16, %c0_17], %69 {strides = array<i32>} : memref<8x8x32xf32, #tpu.memory_space<vmem>>, vector<1x8x32xf32>,
    %c3_i32 = arith.constant 3 : i32
    %cst_18 = arith.constant dense<0.000000e+00> : vector<8x128xf32>
    %70 = tpu.matmul %65, %0, %cst_18 {dimension_numbers = #tpu.dot_dimension_numbers<[1], [0], [0], [1], [0, 0, 1, 1], [], []>} : vector<8x32xf32>, vector<32x128xf32>, vector<8x128xf32> -> vector<8x128xf32>
    %71 = vector.broadcast %1 : vector<1x128xf32> to vector<8x128xf32>
    %72 = arith.addf %70, %71 : vector<8x128xf32>
    %73 = arith.negf %72 : vector<8x128xf32>
    %74 = math.exp %73 : vector<8x128xf32>
    %cst_19 = arith.constant 1.000000e+00 : f32
    %75 = vector.broadcast %cst_19 : f32 to vector<8x128xf32>
    %76 = arith.addf %75, %74 : vector<8x128xf32>
    %77 = arith.divf %75, %76 : vector<8x128xf32>
    %78 = math.tanh %72 : vector<8x128xf32>
    %79 = vector.extract_strided_slice %77 {offsets = [0, 0], sizes = [8, 32], strides = [1, 1]} : vector<8x128xf32> to vector<8x32xf32>
    %80 = vector.extract_strided_slice %77 {offsets = [0, 32], sizes = [8, 32], strides = [1, 1]} : vector<8x128xf32> to vector<8x32xf32>
    %81 = vector.extract_strided_slice %78 {offsets = [0, 64], sizes = [8, 32], strides = [1, 1]} : vector<8x128xf32> to vector<8x32xf32>
    %82 = vector.extract_strided_slice %77 {offsets = [0, 96], sizes = [8, 32], strides = [1, 1]} : vector<8x128xf32> to vector<8x32xf32>
    %83 = arith.mulf %80, %63 : vector<8x32xf32>
    %84 = arith.mulf %79, %81 : vector<8x32xf32>
    %85 = arith.addf %83, %84 : vector<8x32xf32>
    %86 = math.tanh %85 : vector<8x32xf32>
    %87 = arith.mulf %82, %86 : vector<8x32xf32>
    %88 = arith.index_cast %c3_i32 : i32 to index
    %c0_20 = arith.constant 0 : index
    %c0_21 = arith.constant 0 : index
    %89 = vector.load %arg8[%88, %c0_20, %c0_21] : memref<8x8x32xf32, #tpu.memory_space<vmem>>, vector<1x8x32xf32>
    %90 = vector.shape_cast %89 : vector<1x8x32xf32> to vector<8x32xf32>
    %91 = vector.shape_cast %87 : vector<8x32xf32> to vector<1x8x32xf32>
    tpu.vector_store %arg8[%88, %c0_20, %c0_21], %91 {strides = array<i32>} : memref<8x8x32xf32, #tpu.memory_space<vmem>>, vector<1x8x32xf32>,
    %c4_i32 = arith.constant 4 : i32
    %cst_22 = arith.constant dense<0.000000e+00> : vector<8x128xf32>
    %92 = tpu.matmul %87, %0, %cst_22 {dimension_numbers = #tpu.dot_dimension_numbers<[1], [0], [0], [1], [0, 0, 1, 1], [], []>} : vector<8x32xf32>, vector<32x128xf32>, vector<8x128xf32> -> vector<8x128xf32>
    %93 = vector.broadcast %1 : vector<1x128xf32> to vector<8x128xf32>
    %94 = arith.addf %92, %93 : vector<8x128xf32>
    %95 = arith.negf %94 : vector<8x128xf32>
    %96 = math.exp %95 : vector<8x128xf32>
    %cst_23 = arith.constant 1.000000e+00 : f32
    %97 = vector.broadcast %cst_23 : f32 to vector<8x128xf32>
    %98 = arith.addf %97, %96 : vector<8x128xf32>
    %99 = arith.divf %97, %98 : vector<8x128xf32>
    %100 = math.tanh %94 : vector<8x128xf32>
    %101 = vector.extract_strided_slice %99 {offsets = [0, 0], sizes = [8, 32], strides = [1, 1]} : vector<8x128xf32> to vector<8x32xf32>
    %102 = vector.extract_strided_slice %99 {offsets = [0, 32], sizes = [8, 32], strides = [1, 1]} : vector<8x128xf32> to vector<8x32xf32>
    %103 = vector.extract_strided_slice %100 {offsets = [0, 64], sizes = [8, 32], strides = [1, 1]} : vector<8x128xf32> to vector<8x32xf32>
    %104 = vector.extract_strided_slice %99 {offsets = [0, 96], sizes = [8, 32], strides = [1, 1]} : vector<8x128xf32> to vector<8x32xf32>
    %105 = arith.mulf %102, %85 : vector<8x32xf32>
    %106 = arith.mulf %101, %103 : vector<8x32xf32>
    %107 = arith.addf %105, %106 : vector<8x32xf32>
    %108 = math.tanh %107 : vector<8x32xf32>
    %109 = arith.mulf %104, %108 : vector<8x32xf32>
    %110 = arith.index_cast %c4_i32 : i32 to index
    %c0_24 = arith.constant 0 : index
    %c0_25 = arith.constant 0 : index
    %111 = vector.load %arg8[%110, %c0_24, %c0_25] : memref<8x8x32xf32, #tpu.memory_space<vmem>>, vector<1x8x32xf32>
    %112 = vector.shape_cast %111 : vector<1x8x32xf32> to vector<8x32xf32>
    %113 = vector.shape_cast %109 : vector<8x32xf32> to vector<1x8x32xf32>
    tpu.vector_store %arg8[%110, %c0_24, %c0_25], %113 {strides = array<i32>} : memref<8x8x32xf32, #tpu.memory_space<vmem>>, vector<1x8x32xf32>,
    %c5_i32 = arith.constant 5 : i32
    %cst_26 = arith.constant dense<0.000000e+00> : vector<8x128xf32>
    %114 = tpu.matmul %109, %0, %cst_26 {dimension_numbers = #tpu.dot_dimension_numbers<[1], [0], [0], [1], [0, 0, 1, 1], [], []>} : vector<8x32xf32>, vector<32x128xf32>, vector<8x128xf32> -> vector<8x128xf32>
    %115 = vector.broadcast %1 : vector<1x128xf32> to vector<8x128xf32>
    %116 = arith.addf %114, %115 : vector<8x128xf32>
    %117 = arith.negf %116 : vector<8x128xf32>
    %118 = math.exp %117 : vector<8x128xf32>
    %cst_27 = arith.constant 1.000000e+00 : f32
    %119 = vector.broadcast %cst_27 : f32 to vector<8x128xf32>
    %120 = arith.addf %119, %118 : vector<8x128xf32>
    %121 = arith.divf %119, %120 : vector<8x128xf32>
    %122 = math.tanh %116 : vector<8x128xf32>
    %123 = vector.extract_strided_slice %121 {offsets = [0, 0], sizes = [8, 32], strides = [1, 1]} : vector<8x128xf32> to vector<8x32xf32>
    %124 = vector.extract_strided_slice %121 {offsets = [0, 32], sizes = [8, 32], strides = [1, 1]} : vector<8x128xf32> to vector<8x32xf32>
    %125 = vector.extract_strided_slice %122 {offsets = [0, 64], sizes = [8, 32], strides = [1, 1]} : vector<8x128xf32> to vector<8x32xf32>
    %126 = vector.extract_strided_slice %121 {offsets = [0, 96], sizes = [8, 32], strides = [1, 1]} : vector<8x128xf32> to vector<8x32xf32>
    %127 = arith.mulf %124, %107 : vector<8x32xf32>
    %128 = arith.mulf %123, %125 : vector<8x32xf32>
    %129 = arith.addf %127, %128 : vector<8x32xf32>
    %130 = math.tanh %129 : vector<8x32xf32>
    %131 = arith.mulf %126, %130 : vector<8x32xf32>
    %132 = arith.index_cast %c5_i32 : i32 to index
    %c0_28 = arith.constant 0 : index
    %c0_29 = arith.constant 0 : index
    %133 = vector.load %arg8[%132, %c0_28, %c0_29] : memref<8x8x32xf32, #tpu.memory_space<vmem>>, vector<1x8x32xf32>
    %134 = vector.shape_cast %133 : vector<1x8x32xf32> to vector<8x32xf32>
    %135 = vector.shape_cast %131 : vector<8x32xf32> to vector<1x8x32xf32>
    tpu.vector_store %arg8[%132, %c0_28, %c0_29], %135 {strides = array<i32>} : memref<8x8x32xf32, #tpu.memory_space<vmem>>, vector<1x8x32xf32>,
    %c6_i32 = arith.constant 6 : i32
    %cst_30 = arith.constant dense<0.000000e+00> : vector<8x128xf32>
    %136 = tpu.matmul %131, %0, %cst_30 {dimension_numbers = #tpu.dot_dimension_numbers<[1], [0], [0], [1], [0, 0, 1, 1], [], []>} : vector<8x32xf32>, vector<32x128xf32>, vector<8x128xf32> -> vector<8x128xf32>
    %137 = vector.broadcast %1 : vector<1x128xf32> to vector<8x128xf32>
    %138 = arith.addf %136, %137 : vector<8x128xf32>
    %139 = arith.negf %138 : vector<8x128xf32>
    %140 = math.exp %139 : vector<8x128xf32>
    %cst_31 = arith.constant 1.000000e+00 : f32
    %141 = vector.broadcast %cst_31 : f32 to vector<8x128xf32>
    %142 = arith.addf %141, %140 : vector<8x128xf32>
    %143 = arith.divf %141, %142 : vector<8x128xf32>
    %144 = math.tanh %138 : vector<8x128xf32>
    %145 = vector.extract_strided_slice %143 {offsets = [0, 0], sizes = [8, 32], strides = [1, 1]} : vector<8x128xf32> to vector<8x32xf32>
    %146 = vector.extract_strided_slice %143 {offsets = [0, 32], sizes = [8, 32], strides = [1, 1]} : vector<8x128xf32> to vector<8x32xf32>
    %147 = vector.extract_strided_slice %144 {offsets = [0, 64], sizes = [8, 32], strides = [1, 1]} : vector<8x128xf32> to vector<8x32xf32>
    %148 = vector.extract_strided_slice %143 {offsets = [0, 96], sizes = [8, 32], strides = [1, 1]} : vector<8x128xf32> to vector<8x32xf32>
    %149 = arith.mulf %146, %129 : vector<8x32xf32>
    %150 = arith.mulf %145, %147 : vector<8x32xf32>
    %151 = arith.addf %149, %150 : vector<8x32xf32>
    %152 = math.tanh %151 : vector<8x32xf32>
    %153 = arith.mulf %148, %152 : vector<8x32xf32>
    %154 = arith.index_cast %c6_i32 : i32 to index
    %c0_32 = arith.constant 0 : index
    %c0_33 = arith.constant 0 : index
    %155 = vector.load %arg8[%154, %c0_32, %c0_33] : memref<8x8x32xf32, #tpu.memory_space<vmem>>, vector<1x8x32xf32>
    %156 = vector.shape_cast %155 : vector<1x8x32xf32> to vector<8x32xf32>
    %157 = vector.shape_cast %153 : vector<8x32xf32> to vector<1x8x32xf32>
    tpu.vector_store %arg8[%154, %c0_32, %c0_33], %157 {strides = array<i32>} : memref<8x8x32xf32, #tpu.memory_space<vmem>>, vector<1x8x32xf32>,
    %c7_i32 = arith.constant 7 : i32
    %cst_34 = arith.constant dense<0.000000e+00> : vector<8x128xf32>
    %158 = tpu.matmul %153, %0, %cst_34 {dimension_numbers = #tpu.dot_dimension_numbers<[1], [0], [0], [1], [0, 0, 1, 1], [], []>} : vector<8x32xf32>, vector<32x128xf32>, vector<8x128xf32> -> vector<8x128xf32>
    %159 = vector.broadcast %1 : vector<1x128xf32> to vector<8x128xf32>
    %160 = arith.addf %158, %159 : vector<8x128xf32>
    %161 = arith.negf %160 : vector<8x128xf32>
    %162 = math.exp %161 : vector<8x128xf32>
    %cst_35 = arith.constant 1.000000e+00 : f32
    %163 = vector.broadcast %cst_35 : f32 to vector<8x128xf32>
    %164 = arith.addf %163, %162 : vector<8x128xf32>
    %165 = arith.divf %163, %164 : vector<8x128xf32>
    %166 = math.tanh %160 : vector<8x128xf32>
    %167 = vector.extract_strided_slice %165 {offsets = [0, 0], sizes = [8, 32], strides = [1, 1]} : vector<8x128xf32> to vector<8x32xf32>
    %168 = vector.extract_strided_slice %165 {offsets = [0, 32], sizes = [8, 32], strides = [1, 1]} : vector<8x128xf32> to vector<8x32xf32>
    %169 = vector.extract_strided_slice %166 {offsets = [0, 64], sizes = [8, 32], strides = [1, 1]} : vector<8x128xf32> to vector<8x32xf32>
    %170 = vector.extract_strided_slice %165 {offsets = [0, 96], sizes = [8, 32], strides = [1, 1]} : vector<8x128xf32> to vector<8x32xf32>
    %171 = arith.mulf %168, %151 : vector<8x32xf32>
    %172 = arith.mulf %167, %169 : vector<8x32xf32>
    %173 = arith.addf %171, %172 : vector<8x32xf32>
    %174 = math.tanh %173 : vector<8x32xf32>
    %175 = arith.mulf %170, %174 : vector<8x32xf32>
    %176 = arith.index_cast %c7_i32 : i32 to index
    %c0_36 = arith.constant 0 : index
    %c0_37 = arith.constant 0 : index
    %177 = vector.load %arg8[%176, %c0_36, %c0_37] : memref<8x8x32xf32, #tpu.memory_space<vmem>>, vector<1x8x32xf32>
    %178 = vector.shape_cast %177 : vector<1x8x32xf32> to vector<8x32xf32>
    %179 = vector.shape_cast %175 : vector<8x32xf32> to vector<1x8x32xf32>
    tpu.vector_store %arg8[%176, %c0_36, %c0_37], %179 {strides = array<i32>} : memref<8x8x32xf32, #tpu.memory_space<vmem>>, vector<1x8x32xf32>,
    %c8_i32 = arith.constant 8 : i32
    %c0_38 = arith.constant 0 : index
    %c0_39 = arith.constant 0 : index
    %c0_40 = arith.constant 0 : index
    %180 = vector.load %arg8[%c0_38, %c0_39, %c0_40] : memref<8x8x32xf32, #tpu.memory_space<vmem>>, vector<8x8x32xf32>
    %181 = vector.shape_cast %180 : vector<8x8x32xf32> to vector<64x32xf32>
    %c0_41 = arith.constant 0 : index
    %c0_42 = arith.constant 0 : index
    %182 = vector.load %arg5[%c0_41, %c0_42] : memref<32x128xf32, #tpu.memory_space<vmem>>, vector<32x128xf32>
    %cst_43 = arith.constant dense<0.000000e+00> : vector<64x128xf32>
    %183 = tpu.matmul %181, %182, %cst_43 {dimension_numbers = #tpu.dot_dimension_numbers<[1], [0], [0], [1], [0, 0, 1, 1], [], []>} : vector<64x32xf32>, vector<32x128xf32>, vector<64x128xf32> -> vector<64x128xf32>
    %c0_44 = arith.constant 0 : index
    %c0_45 = arith.constant 0 : index
    %184 = vector.load %arg6[%c0_44, %c0_45] : memref<1x128xf32, #tpu.memory_space<vmem>>, vector<1x128xf32>
    %185 = vector.broadcast %184 : vector<1x128xf32> to vector<64x128xf32>
    %186 = arith.addf %183, %185 : vector<64x128xf32>
    %187 = vector.shape_cast %186 : vector<64x128xf32> to vector<8x8x128xf32>
    %c0_46 = arith.constant 0 : index
    %c0_47 = arith.constant 0 : index
    %c0_48 = arith.constant 0 : index
    %188 = vector.load %arg7[%c0_46, %c0_47, %c0_48] : memref<8x8x128xf32, #tpu.memory_space<vmem>>, vector<8x8x128xf32>
    tpu.vector_store %arg7[%c0_46, %c0_47, %c0_48], %187 {strides = array<i32>} : memref<8x8x128xf32, #tpu.memory_space<vmem>>, vector<8x8x128xf32>,
    return
  }
  func.func @transform_0(%arg0: i32) -> (i32, i32) {
    %c0_i32 = arith.constant 0 : i32
    %c0_i32_0 = arith.constant 0 : i32
    return %arg0, %c0_i32 : i32, i32
  }
  func.func @transform_1(%arg0: i32) -> (i32, i32) {
    %c0_i32 = arith.constant 0 : i32
    %c0_i32_0 = arith.constant 0 : i32
    return %arg0, %c0_i32 : i32, i32
  }
  func.func @transform_2(%arg0: i32) -> (i32, i32) {
    %c0_i32 = arith.constant 0 : i32
    %c0_i32_0 = arith.constant 0 : i32
    %c0_i32_1 = arith.constant 0 : i32
    return %c0_i32, %c0_i32_0 : i32, i32
  }
  func.func @transform_3(%arg0: i32) -> (i32, i32) {
    %c0_i32 = arith.constant 0 : i32
    %c0_i32_0 = arith.constant 0 : i32
    %c0_i32_1 = arith.constant 0 : i32
    return %c0_i32, %c0_i32_0 : i32, i32
  }
  func.func @transform_4(%arg0: i32) -> (i32, i32) {
    %c0_i32 = arith.constant 0 : i32
    %c0_i32_0 = arith.constant 0 : i32
    %c0_i32_1 = arith.constant 0 : i32
    return %c0_i32, %c0_i32_0 : i32, i32
  }
  func.func @transform_5(%arg0: i32) -> (i32, i32) {
    %c0_i32 = arith.constant 0 : i32
    %c0_i32_0 = arith.constant 0 : i32
    %c0_i32_1 = arith.constant 0 : i32
    return %c0_i32, %c0_i32_0 : i32, i32
  }
  func.func @transform_6(%arg0: i32) -> (i32, i32, i32) {
    %c0_i32 = arith.constant 0 : i32
    %c0_i32_0 = arith.constant 0 : i32
    %c0_i32_1 = arith.constant 0 : i32
    return %c0_i32, %arg0, %c0_i32_0 : i32, i32, i32
  }
}

</mosaic_0001>

<llo_original>
// kernel: tpu_custom_call.1
$region0: #{tpu_custom_call.1}
  #allocation0 [shape = 'u32[]', space=smem, size = 0x4, offset = 0x4, fixed_abs, tag = 'smem constant byte address 0x4 - core index']
  #allocation1 [shape = 'u32[144,128]{1,0:T(1,128)}', space=vmem, size = 0x12000, scoped, tag = 'internal scratch']
  #allocation2 [shape = 'f32[8,8,32]{2,1,0:T(8,128)}', space=vmem, size = 0x8000, scoped, tag = 'scratch operand']
  %s0 = inlined_call_operand.hbm [shape: f32[8,32], index: 0, kind: input, shape index: {}]
  %s1 = inlined_call_operand.hbm [shape: f32[8,32], index: 1, kind: input, shape index: {}]
  %s2 = inlined_call_operand.hbm [shape: f32[32,128], index: 2, kind: input, shape index: {}]
  %s3 = inlined_call_operand.vmem [shape: f32[1,128], index: 3, kind: input, shape index: {}]
  %s4 = inlined_call_operand.hbm [shape: f32[32,128], index: 4, kind: input, shape index: {}]
  %s5 = inlined_call_operand.vmem [shape: f32[1,128], index: 5, kind: input, shape index: {}]
  %s6 = inlined_call_operand.hbm [shape: f32[8,8,128], index: 6, kind: output, shape index: {}]
  %s7 = sld [smem:[#allocation0]]
  $region50: #{tpu_custom_call.1} parent=0
    _
  %s9 = ssub.s32 1, %s7
  %s10 = scalar_select 0, %s9, %s7
  $region1: #{tpu_custom_call.1} parent=0
    #allocation3 [shape = 'u8[4096]{0}', space=vmem, size = 0x1000, scoped, tag = 'input window, operand 0, single buffered']
    #allocation4 [shape = 's32[1]{0}', space=sflag, size = 0x4, scoped, tag = 'scoped memory for tpu_custom_call.1']
    #allocation5 [shape = 's32[1]{0}', space=sflag, size = 0x4, scoped, tag = 'scoped memory for tpu_custom_call.1']
    #allocation6 [shape = 'u8[4096]{0}', space=vmem, size = 0x1000, scoped, tag = 'input window, operand 1, single buffered']
    #allocation7 [shape = 's32[1]{0}', space=sflag, size = 0x4, scoped, tag = 'scoped memory for tpu_custom_call.1']
    #allocation8 [shape = 'u8[16384]{0}', space=vmem, size = 0x4000, scoped, tag = 'input window, operand 2, single buffered']
    #allocation9 [shape = 'u8[16384]{0}', space=vmem, size = 0x4000, scoped, tag = 'input window, operand 4, single buffered']
    #allocation10 [shape = 's32[1]{0}', space=sflag, size = 0x4, scoped, tag = 'scoped memory for tpu_custom_call.1']
    #allocation11 [shape = 'u8[32768]{0}', space=vmem, size = 0x8000, scoped, tag = 'output window, operand 0, single buffered']
    %11 = vsyncpa [#allocation4], 0
    %12 = vsyncpa [#allocation7], 0
    %13 = vsyncpa [#allocation10], 0
    %14 = vsyncpa [#allocation5], 0
    // Predicated region
    $region2: #{tpu_custom_call.1} parent=1 // pred_check
      _
    $region3: #{tpu_custom_call.1} parent=1 // pred_check_branch
      %16 = sbr.rel (0) target = $region5
    $region4: #{tpu_custom_call.1} parent=1 // pred_region
      %s18 = ssub.s32 128, 128
      %19 = vsyncadd [#allocation4], %s18
      %s21 = sshll.u32 [#allocation3], 4
      %s22 = int_to_ptr.vmem [resolvable:$true] %s21
      %24 = dma.hbm_to_vmem [thread:$0]  %s0, 128, %s22, [#allocation4]
    $region5: #{tpu_custom_call.1} parent=1 // pred_fallthru
      _
    // Predicated region
    $region6: #{tpu_custom_call.1} parent=1 // pred_check
      _
    $region7: #{tpu_custom_call.1} parent=1 // pred_check_branch
      %26 = sbr.rel (0) target = $region9
    $region8: #{tpu_custom_call.1} parent=1 // pred_region
      %s28 = ssub.s32 128, 128
      %29 = vsyncadd [#allocation7], %s28
      %s31 = sshll.u32 [#allocation6], 4
      %s32 = int_to_ptr.vmem [resolvable:$true] %s31
      %34 = dma.hbm_to_vmem [thread:$0]  %s1, 128, %s32, [#allocation7]
    $region9: #{tpu_custom_call.1} parent=1 // pred_fallthru
      _
    // Predicated region
    $region10: #{tpu_custom_call.1} parent=1 // pred_check
      _
    $region11: #{tpu_custom_call.1} parent=1 // pred_check_branch
      %36 = sbr.rel (0) target = $region13
    $region12: #{tpu_custom_call.1} parent=1 // pred_region
      %s38 = ssub.s32 512, 512
      %39 = vsyncadd [#allocation7], %s38
      %s40 = sshll.u32 [#allocation8], 4
      %s41 = int_to_ptr.vmem [resolvable:$true] %s40
      %46 = dma.hbm_to_vmem [thread:$0]  %s2, 512, %s41, [#allocation7], 128, 128, 8
    $region13: #{tpu_custom_call.1} parent=1 // pred_fallthru
      _
    // Predicated region
    $region14: #{tpu_custom_call.1} parent=1 // pred_check
      _
    $region15: #{tpu_custom_call.1} parent=1 // pred_check_branch
      %48 = sbr.rel (0) target = $region17
    $region16: #{tpu_custom_call.1} parent=1 // pred_region
      _
    $region17: #{tpu_custom_call.1} parent=1 // pred_fallthru
      _
    // Predicated region
    $region18: #{tpu_custom_call.1} parent=1 // pred_check
      _
    $region19: #{tpu_custom_call.1} parent=1 // pred_check_branch
      %50 = sbr.rel (0) target = $region21
    $region20: #{tpu_custom_call.1} parent=1 // pred_region
      %s52 = ssub.s32 512, 512
      %53 = vsyncadd [#allocation10], %s52
      %s54 = sshll.u32 [#allocation9], 4
      %s55 = int_to_ptr.vmem [resolvable:$true] %s54
      %60 = dma.hbm_to_vmem [thread:$0]  %s4, 512, %s55, [#allocation10], 128, 128, 8
    $region21: #{tpu_custom_call.1} parent=1 // pred_fallthru
      _
    // Predicated region
    $region22: #{tpu_custom_call.1} parent=1 // pred_check
      _
    $region23: #{tpu_custom_call.1} parent=1 // pred_check_branch
      %62 = sbr.rel (0) target = $region25
    $region24: #{tpu_custom_call.1} parent=1 // pred_region
      _
    $region25: #{tpu_custom_call.1} parent=1 // pred_fallthru
      _
    // Predicated region
    $region26: #{tpu_custom_call.1} parent=1 // pred_check
      _
    $region27: #{tpu_custom_call.1} parent=1 // pred_check_branch
      %64 = sbr.rel (0) target = $region29
    $region28: #{tpu_custom_call.1} parent=1 // pred_region
      %65 = dma.done [#allocation4], 128
    $region29: #{tpu_custom_call.1} parent=1 // pred_fallthru
      _
    // Predicated region
    $region30: #{tpu_custom_call.1} parent=1 // pred_check
      _
    $region31: #{tpu_custom_call.1} parent=1 // pred_check_branch
      %67 = sbr.rel (0) target = $region33
    $region32: #{tpu_custom_call.1} parent=1 // pred_region
      %68 = dma.done [#allocation7], 128
    $region33: #{tpu_custom_call.1} parent=1 // pred_fallthru
      _
    // Predicated region
    $region34: #{tpu_custom_call.1} parent=1 // pred_check
      _
    $region35: #{tpu_custom_call.1} parent=1 // pred_check_branch
      %70 = sbr.rel (0) target = $region37
    $region36: #{tpu_custom_call.1} parent=1 // pred_region
      %71 = dma.done [#allocation7], 512
    $region37: #{tpu_custom_call.1} parent=1 // pred_fallthru
      _
    // Predicated region
    $region38: #{tpu_custom_call.1} parent=1 // pred_check
      _
    $region39: #{tpu_custom_call.1} parent=1 // pred_check_branch
      %73 = sbr.rel (0) target = $region41
    $region40: #{tpu_custom_call.1} parent=1 // pred_region
      %74 = dma.done [#allocation10], 512
    $region41: #{tpu_custom_call.1} parent=1 // pred_fallthru
      _
    %v75 = vld [vmem:[#allocation8] sm:$0xff]
    %v76 = vld [vmem:[#allocation8 + $0x8] sm:$0xff]
    %v77 = vld [vmem:[#allocation8 + $0x10] sm:$0xff]
    %v78 = vld [vmem:[#allocation8 + $0x18] sm:$0xff]
    %v79 = vld [vmem:[%s3] sm:$0x1]
    %v80 = vld [vmem:[#allocation3] sm:$0xff]
    %v81 = vld [vmem:[#allocation6] sm:$0xff]
    %v83 = vlaneseq
    %v84 = vshrl.u32 %v83, 7
    %v85 = vsub.s32 0, %v84
    %v86 = vrot.slane %v79, %v85
    %vm88 = vcmask 261120
    %v90 = vsel %vm88, %v80, 0
    %92 = vmatprep.subr.mxu0 0.0
    %93 = vmatpush1.msra.mxu0 0.0
    %94 = vmatprep.subr.mxu0 0.0
    %95 = vmatpush1.msra.mxu0 0.0
    %96 = vmatprep.subr.mxu0 0.0
    %97 = vmatpush1.msra.mxu0 0.0
    %98 = vmatprep.subr.mxu0 0.0
    %99 = vmatpush1.msra.mxu0 0.0
    %100 = vmatprep.subr.mxu0 0.0
    %101 = vmatpush1.msra.mxu0 0.0
    %102 = vmatprep.subr.mxu0 0.0
    %103 = vmatpush1.msra.mxu0 0.0
    %104 = vmatprep.subr.mxu0 0.0
    %105 = vmatpush1.msra.mxu0 0.0
    %106 = vmatprep.subr.mxu0 0.0
    %107 = vmatpush1.msra.mxu0 0.0
    %108 = vmatprep.subr.mxu0 0.0
    %109 = vmatpush1.msra.mxu0 0.0
    %110 = vmatprep.subr.mxu0 0.0
    %111 = vmatpush1.msra.mxu0 0.0
    %112 = vmatprep.subr.mxu0 0.0
    %113 = vmatpush1.msra.mxu0 0.0
    %114 = vmatprep.subr.mxu0 0.0
    %115 = vmatpush1.msra.mxu0 0.0
    %116 = vmatprep.subr.mxu0 0.0
    %117 = vmatpush1.msra.mxu0 %v78
    %118 = vmatprep.subr.mxu0 0.0
    %119 = vmatpush1.msra.mxu0 %v77
    %120 = vmatprep.subr.mxu0 0.0
    %121 = vmatpush1.msra.mxu0 %v76
    %122 = vmatprep.subr.mxu0 0.0
    %123 = vmatpush1.msra.mxu0 %v75
    %124 = vmatprep.subr.mxu0 0.0
    %125 = vmatpush2.msra.mxu0 0.0
    %126 = vmatprep.subr.mxu0 0.0
    %127 = vmatpush2.msra.mxu0 0.0
    %128 = vmatprep.subr.mxu0 0.0
    %129 = vmatpush2.msra.mxu0 0.0
    %130 = vmatprep.subr.mxu0 0.0
    %131 = vmatpush2.msra.mxu0 0.0
    %132 = vmatprep.subr.mxu0 0.0
    %133 = vmatpush2.msra.mxu0 0.0
    %134 = vmatprep.subr.mxu0 0.0
    %135 = vmatpush2.msra.mxu0 0.0
    %136 = vmatprep.subr.mxu0 0.0
    %137 = vmatpush2.msra.mxu0 0.0
    %138 = vmatprep.subr.mxu0 0.0
    %139 = vmatpush2.msra.mxu0 0.0
    %140 = vmatprep.subr.mxu0 0.0
    %141 = vmatpush2.msra.mxu0 0.0
    %142 = vmatprep.subr.mxu0 0.0
    %143 = vmatpush2.msra.mxu0 0.0
    %144 = vmatprep.subr.mxu0 0.0
    %145 = vmatpush2.msra.mxu0 0.0
    %146 = vmatprep.subr.mxu0 0.0
    %147 = vmatpush2.msra.mxu0 0.0
    %148 = vmatprep.subr.mxu0 0.0
    %149 = vmatpush2.msra.mxu0 0.0
    %150 = vmatprep.subr.mxu0 0.0
    %151 = vmatpush2.msra.mxu0 0.0
    %152 = vmatprep.subr.mxu0 0.0
    %153 = vmatpush2.msra.mxu0 0.0
    %154 = vmatprep.subr.mxu0 0.0
    %155 = vmatpush2.msra.mxu0 0.0
    %156 = vmatprep.mubr.f32.mxu0 0.0
    %157 = vmatmul.mubr.f32.gmra.mxu0 %v90
    %v158 = vpop.f32.mrf.mxu0
    %v159 = vadd.f32 %v86, %v158
    %v160 = vpop.f32.mrf.mxu0
    %161 = vdwg.mxu0
    %v162 = vxor.u32 %v159, 2147483648
    %v163 = vmul.f32 %v162, 1.442695
    %v164 = vpow.pop %v163
    %v165 = vadd.f32 %v164, 1.0
    %v166 = vrcp.pop %v165
    %v167 = vmul.f32 1.0, %v166
    %v168 = vtanh.pop %v159
    %170 = vrot.lane.b32.xlu0 %v81, 32
    %v171 = vpop.permute.xlu0 %170
    %v173 = vmul.f32 %v167, %v171
    %175 = vrot.lane.b32.xlu0 %v168, 64
    %v176 = vpop.permute.xlu0 %175
    %v178 = vmul.f32 %v167, %v176
    %180 = vrot.lane.b32.xlu0 %v178, 32
    %v181 = vpop.permute.xlu0 %180
    %v183 = vadd.f32 %v173, %v181
    %v184 = vtanh.pop %v183
    %186 = vrot.lane.b32.xlu0 %v184, 64
    %v187 = vpop.permute.xlu0 %186
    %v189 = vmul.f32 %v167, %v187
    %191 = vrot.lane.b32.xlu0 %v189, 32
    %v192 = vpop.permute.xlu0 %191
    %194 = vst.msk [vmem:[#allocation2] sm:$0xff] %vm88, %v192
    %v195 = vsel %vm88, %v192, 0
    %197 = vmatprep.subr.mxu0 0.0
    %198 = vmatpush1.msra.mxu0 0.0
    %199 = vmatprep.subr.mxu0 0.0
    %200 = vmatpush1.msra.mxu0 0.0
    %201 = vmatprep.subr.mxu0 0.0
    %202 = vmatpush1.msra.mxu0 0.0
    %203 = vmatprep.subr.mxu0 0.0
    %204 = vmatpush1.msra.mxu0 0.0
    %205 = vmatprep.subr.mxu0 0.0
    %206 = vmatpush1.msra.mxu0 0.0
    %207 = vmatprep.subr.mxu0 0.0
    %208 = vmatpush1.msra.mxu0 0.0
    %209 = vmatprep.subr.mxu0 0.0
    %210 = vmatpush1.msra.mxu0 0.0
    %211 = vmatprep.subr.mxu0 0.0
    %212 = vmatpush1.msra.mxu0 0.0
    %213 = vmatprep.subr.mxu0 0.0
    %214 = vmatpush1.msra.mxu0 0.0
    %215 = vmatprep.subr.mxu0 0.0
    %216 = vmatpush1.msra.mxu0 0.0
    %217 = vmatprep.subr.mxu0 0.0
    %218 = vmatpush1.msra.mxu0 0.0
    %219 = vmatprep.subr.mxu0 0.0
    %220 = vmatpush1.msra.mxu0 0.0
    %221 = vmatprep.subr.mxu0 0.0
    %222 = vmatpush1.msra.mxu0 %v78
    %223 = vmatprep.subr.mxu0 0.0
    %224 = vmatpush1.msra.mxu0 %v77
    %225 = vmatprep.subr.mxu0 0.0
    %226 = vmatpush1.msra.mxu0 %v76
    %227 = vmatprep.subr.mxu0 0.0
    %228 = vmatpush1.msra.mxu0 %v75
    %229 = vmatprep.subr.mxu0 0.0
    %230 = vmatpush2.msra.mxu0 0.0
    %231 = vmatprep.subr.mxu0 0.0
    %232 = vmatpush2.msra.mxu0 0.0
    %233 = vmatprep.subr.mxu0 0.0
    %234 = vmatpush2.msra.mxu0 0.0
    %235 = vmatprep.subr.mxu0 0.0
    %236 = vmatpush2.msra.mxu0 0.0
    %237 = vmatprep.subr.mxu0 0.0
    %238 = vmatpush2.msra.mxu0 0.0
    %239 = vmatprep.subr.mxu0 0.0
    %240 = vmatpush2.msra.mxu0 0.0
    %241 = vmatprep.subr.mxu0 0.0
    %242 = vmatpush2.msra.mxu0 0.0
    %243 = vmatprep.subr.mxu0 0.0
    %244 = vmatpush2.msra.mxu0 0.0
    %245 = vmatprep.subr.mxu0 0.0
    %246 = vmatpush2.msra.mxu0 0.0
    %247 = vmatprep.subr.mxu0 0.0
    %248 = vmatpush2.msra.mxu0 0.0
    %249 = vmatprep.subr.mxu0 0.0
    %250 = vmatpush2.msra.mxu0 0.0
    %251 = vmatprep.subr.mxu0 0.0
    %252 = vmatpush2.msra.mxu0 0.0
    %253 = vmatprep.subr.mxu0 0.0
    %254 = vmatpush2.msra.mxu0 0.0
    %255 = vmatprep.subr.mxu0 0.0
    %256 = vmatpush2.msra.mxu0 0.0
    %257 = vmatprep.subr.mxu0 0.0
    %258 = vmatpush2.msra.mxu0 0.0
    %259 = vmatprep.subr.mxu0 0.0
    %260 = vmatpush2.msra.mxu0 0.0
    %261 = vmatprep.mubr.f32.mxu0 0.0
    %262 = vmatmul.mubr.f32.gmra.mxu0 %v195
    %v263 = vpop.f32.mrf.mxu0
    %v264 = vadd.f32 %v86, %v263
    %v265 = vpop.f32.mrf.mxu0
    %266 = vdwg.mxu0
    %v267 = vxor.u32 %v264, 2147483648
    %v268 = vmul.f32 %v267, 1.442695
    %v269 = vpow.pop %v268
    %v270 = vadd.f32 %v269, 1.0
    %v271 = vrcp.pop %v270
    %v272 = vmul.f32 1.0, %v271
    %v273 = vtanh.pop %v264
    %v274 = vmul.f32 %v272, %v183
    %276 = vrot.lane.b32.xlu0 %v273, 64
    %v277 = vpop.permute.xlu0 %276
    %v279 = vmul.f32 %v272, %v277
    %281 = vrot.lane.b32.xlu0 %v279, 32
    %v282 = vpop.permute.xlu0 %281
    %v284 = vadd.f32 %v274, %v282
    %v285 = vtanh.pop %v284
    %287 = vrot.lane.b32.xlu0 %v285, 64
    %v288 = vpop.permute.xlu0 %287
    %v290 = vmul.f32 %v272, %v288
    %292 = vrot.lane.b32.xlu0 %v290, 32
    %v293 = vpop.permute.xlu0 %292
    %s295 = scalar_lea.vmem [#allocation2], 8
    %296 = vst.msk [vmem:[%s295] sm:$0xff] %vm88, %v293
    %v297 = vsel %vm88, %v293, 0
    %299 = vmatprep.subr.mxu0 0.0
    %300 = vmatpush1.msra.mxu0 0.0
    %301 = vmatprep.subr.mxu0 0.0
    %302 = vmatpush1.msra.mxu0 0.0
    %303 = vmatprep.subr.mxu0 0.0
    %304 = vmatpush1.msra.mxu0 0.0
    %305 = vmatprep.subr.mxu0 0.0
    %306 = vmatpush1.msra.mxu0 0.0
    %307 = vmatprep.subr.mxu0 0.0
    %308 = vmatpush1.msra.mxu0 0.0
    %309 = vmatprep.subr.mxu0 0.0
    %310 = vmatpush1.msra.mxu0 0.0
    %311 = vmatprep.subr.mxu0 0.0
    %312 = vmatpush1.msra.mxu0 0.0
    %313 = vmatprep.subr.mxu0 0.0
    %314 = vmatpush1.msra.mxu0 0.0
    %315 = vmatprep.subr.mxu0 0.0
    %316 = vmatpush1.msra.mxu0 0.0
    %317 = vmatprep.subr.mxu0 0.0
    %318 = vmatpush1.msra.mxu0 0.0
    %319 = vmatprep.subr.mxu0 0.0
    %320 = vmatpush1.msra.mxu0 0.0
    %321 = vmatprep.subr.mxu0 0.0
    %322 = vmatpush1.msra.mxu0 0.0
    %323 = vmatprep.subr.mxu0 0.0
    %324 = vmatpush1.msra.mxu0 %v78
    %325 = vmatprep.subr.mxu0 0.0
    %326 = vmatpush1.msra.mxu0 %v77
    %327 = vmatprep.subr.mxu0 0.0
    %328 = vmatpush1.msra.mxu0 %v76
    %329 = vmatprep.subr.mxu0 0.0
    %330 = vmatpush1.msra.mxu0 %v75
    %331 = vmatprep.subr.mxu0 0.0
    %332 = vmatpush2.msra.mxu0 0.0
    %333 = vmatprep.subr.mxu0 0.0
    %334 = vmatpush2.msra.mxu0 0.0
    %335 = vmatprep.subr.mxu0 0.0
    %336 = vmatpush2.msra.mxu0 0.0
    %337 = vmatprep.subr.mxu0 0.0
    %338 = vmatpush2.msra.mxu0 0.0
    %339 = vmatprep.subr.mxu0 0.0
    %340 = vmatpush2.msra.mxu0 0.0
    %341 = vmatprep.subr.mxu0 0.0
    %342 = vmatpush2.msra.mxu0 0.0
    %343 = vmatprep.subr.mxu0 0.0
    %344 = vmatpush2.msra.mxu0 0.0
    %345 = vmatprep.subr.mxu0 0.0
    %346 = vmatpush2.msra.mxu0 0.0
    %347 = vmatprep.subr.mxu0 0.0
    %348 = vmatpush2.msra.mxu0 0.0
    %349 = vmatprep.subr.mxu0 0.0
    %350 = vmatpush2.msra.mxu0 0.0
    %351 = vmatprep.subr.mxu0 0.0
    %352 = vmatpush2.msra.mxu0 0.0
    %353 = vmatprep.subr.mxu0 0.0
    %354 = vmatpush2.msra.mxu0 0.0
    %355 = vmatprep.subr.mxu0 0.0
    %356 = vmatpush2.msra.mxu0 0.0
    %357 = vmatprep.subr.mxu0 0.0
    %358 = vmatpush2.msra.mxu0 0.0
    %359 = vmatprep.subr.mxu0 0.0
    %360 = vmatpush2.msra.mxu0 0.0
    %361 = vmatprep.subr.mxu0 0.0
    %362 = vmatpush2.msra.mxu0 0.0
    %363 = vmatprep.mubr.f32.mxu0 0.0
    %364 = vmatmul.mubr.f32.gmra.mxu0 %v297
    %v365 = vpop.f32.mrf.mxu0
    %v366 = vadd.f32 %v86, %v365
    %v367 = vpop.f32.mrf.mxu0
    %368 = vdwg.mxu0
    %v369 = vxor.u32 %v366, 2147483648
    %v370 = vmul.f32 %v369, 1.442695
    %v371 = vpow.pop %v370
    %v372 = vadd.f32 %v371, 1.0
    %v373 = vrcp.pop %v372
    %v374 = vmul.f32 1.0, %v373
    %v375 = vtanh.pop %v366
    %v376 = vmul.f32 %v374, %v284
    %378 = vrot.lane.b32.xlu0 %v375, 64
    %v379 = vpop.permute.xlu0 %378
    %v381 = vmul.f32 %v374, %v379
    %383 = vrot.lane.b32.xlu0 %v381, 32
    %v384 = vpop.permute.xlu0 %383
    %v386 = vadd.f32 %v376, %v384
    %v387 = vtanh.pop %v386
    %389 = vrot.lane.b32.xlu0 %v387, 64
    %v390 = vpop.permute.xlu0 %389
    %v392 = vmul.f32 %v374, %v390
    %394 = vrot.lane.b32.xlu0 %v392, 32
    %v395 = vpop.permute.xlu0 %394
    %s397 = scalar_lea.vmem [#allocation2], 16
    %398 = vst.msk [vmem:[%s397] sm:$0xff] %vm88, %v395
    %v399 = vsel %vm88, %v395, 0
    %401 = vmatprep.subr.mxu0 0.0
    %402 = vmatpush1.msra.mxu0 0.0
    %403 = vmatprep.subr.mxu0 0.0
    %404 = vmatpush1.msra.mxu0 0.0
    %405 = vmatprep.subr.mxu0 0.0
    %406 = vmatpush1.msra.mxu0 0.0
    %407 = vmatprep.subr.mxu0 0.0
    %408 = vmatpush1.msra.mxu0 0.0
    %409 = vmatprep.subr.mxu0 0.0
    %410 = vmatpush1.msra.mxu0 0.0
    %411 = vmatprep.subr.mxu0 0.0
    %412 = vmatpush1.msra.mxu0 0.0
    %413 = vmatprep.subr.mxu0 0.0
    %414 = vmatpush1.msra.mxu0 0.0
    %415 = vmatprep.subr.mxu0 0.0
    %416 = vmatpush1.msra.mxu0 0.0
    %417 = vmatprep.subr.mxu0 0.0
    %418 = vmatpush1.msra.mxu0 0.0
    %419 = vmatprep.subr.mxu0 0.0
    %420 = vmatpush1.msra.mxu0 0.0
    %421 = vmatprep.subr.mxu0 0.0
    %422 = vmatpush1.msra.mxu0 0.0
    %423 = vmatprep.subr.mxu0 0.0
    %424 = vmatpush1.msra.mxu0 0.0
    %425 = vmatprep.subr.mxu0 0.0
    %426 = vmatpush1.msra.mxu0 %v78
    %427 = vmatprep.subr.mxu0 0.0
    %428 = vmatpush1.msra.mxu0 %v77
    %429 = vmatprep.subr.mxu0 0.0
    %430 = vmatpush1.msra.mxu0 %v76
    %431 = vmatprep.subr.mxu0 0.0
    %432 = vmatpush1.msra.mxu0 %v75
    %433 = vmatprep.subr.mxu0 0.0
    %434 = vmatpush2.msra.mxu0 0.0
    %435 = vmatprep.subr.mxu0 0.0
    %436 = vmatpush2.msra.mxu0 0.0
    %437 = vmatprep.subr.mxu0 0.0
    %438 = vmatpush2.msra.mxu0 0.0
    %439 = vmatprep.subr.mxu0 0.0
    %440 = vmatpush2.msra.mxu0 0.0
    %441 = vmatprep.subr.mxu0 0.0
    %442 = vmatpush2.msra.mxu0 0.0
    %443 = vmatprep.subr.mxu0 0.0
    %444 = vmatpush2.msra.mxu0 0.0
    %445 = vmatprep.subr.mxu0 0.0
    %446 = vmatpush2.msra.mxu0 0.0
    %447 = vmatprep.subr.mxu0 0.0
    %448 = vmatpush2.msra.mxu0 0.0
    %449 = vmatprep.subr.mxu0 0.0
    %450 = vmatpush2.msra.mxu0 0.0
    %451 = vmatprep.subr.mxu0 0.0
    %452 = vmatpush2.msra.mxu0 0.0
    %453 = vmatprep.subr.mxu0 0.0
    %454 = vmatpush2.msra.mxu0 0.0
    %455 = vmatprep.subr.mxu0 0.0
    %456 = vmatpush2.msra.mxu0 0.0
    %457 = vmatprep.subr.mxu0 0.0
    %458 = vmatpush2.msra.mxu0 0.0
    %459 = vmatprep.subr.mxu0 0.0
    %460 = vmatpush2.msra.mxu0 0.0
    %461 = vmatprep.subr.mxu0 0.0
    %462 = vmatpush2.msra.mxu0 0.0
    %463 = vmatprep.subr.mxu0 0.0
    %464 = vmatpush2.msra.mxu0 0.0
    %465 = vmatprep.mubr.f32.mxu0 0.0
    %466 = vmatmul.mubr.f32.gmra.mxu0 %v399
    %v467 = vpop.f32.mrf.mxu0
    %v468 = vadd.f32 %v86, %v467
    %v469 = vpop.f32.mrf.mxu0
    %470 = vdwg.mxu0
    %v471 = vxor.u32 %v468, 2147483648
    %v472 = vmul.f32 %v471, 1.442695
    %v473 = vpow.pop %v472
    %v474 = vadd.f32 %v473, 1.0
    %v475 = vrcp.pop %v474
    %v476 = vmul.f32 1.0, %v475
    %v477 = vtanh.pop %v468
    %v478 = vmul.f32 %v476, %v386
    %480 = vrot.lane.b32.xlu0 %v477, 64
    %v481 = vpop.permute.xlu0 %480
    %v483 = vmul.f32 %v476, %v481
    %485 = vrot.lane.b32.xlu0 %v483, 32
    %v486 = vpop.permute.xlu0 %485
    %v488 = vadd.f32 %v478, %v486
    %v489 = vtanh.pop %v488
    %491 = vrot.lane.b32.xlu0 %v489, 64
    %v492 = vpop.permute.xlu0 %491
    %v494 = vmul.f32 %v476, %v492
    %496 = vrot.lane.b32.xlu0 %v494, 32
    %v497 = vpop.permute.xlu0 %496
    %s499 = scalar_lea.vmem [#allocation2], 24
    %500 = vst.msk [vmem:[%s499] sm:$0xff] %vm88, %v497
    %v501 = vsel %vm88, %v497, 0
    %503 = vmatprep.subr.mxu0 0.0
    %504 = vmatpush1.msra.mxu0 0.0
    %505 = vmatprep.subr.mxu0 0.0
    %506 = vmatpush1.msra.mxu0 0.0
    %507 = vmatprep.subr.mxu0 0.0
    %508 = vmatpush1.msra.mxu0 0.0
    %509 = vmatprep.subr.mxu0 0.0
    %510 = vmatpush1.msra.mxu0 0.0
    %511 = vmatprep.subr.mxu0 0.0
    %512 = vmatpush1.msra.mxu0 0.0
    %513 = vmatprep.subr.mxu0 0.0
    %514 = vmatpush1.msra.mxu0 0.0
    %515 = vmatprep.subr.mxu0 0.0
    %516 = vmatpush1.msra.mxu0 0.0
    %517 = vmatprep.subr.mxu0 0.0
    %518 = vmatpush1.msra.mxu0 0.0
    %519 = vmatprep.subr.mxu0 0.0
    %520 = vmatpush1.msra.mxu0 0.0
    %521 = vmatprep.subr.mxu0 0.0
    %522 = vmatpush1.msra.mxu0 0.0
    %523 = vmatprep.subr.mxu0 0.0
    %524 = vmatpush1.msra.mxu0 0.0
    %525 = vmatprep.subr.mxu0 0.0
    %526 = vmatpush1.msra.mxu0 0.0
    %527 = vmatprep.subr.mxu0 0.0
    %528 = vmatpush1.msra.mxu0 %v78
    %529 = vmatprep.subr.mxu0 0.0
    %530 = vmatpush1.msra.mxu0 %v77
    %531 = vmatprep.subr.mxu0 0.0
    %532 = vmatpush1.msra.mxu0 %v76
    %533 = vmatprep.subr.mxu0 0.0
    %534 = vmatpush1.msra.mxu0 %v75
    %535 = vmatprep.subr.mxu0 0.0
    %536 = vmatpush2.msra.mxu0 0.0
    %537 = vmatprep.subr.mxu0 0.0
    %538 = vmatpush2.msra.mxu0 0.0
    %539 = vmatprep.subr.mxu0 0.0
    %540 = vmatpush2.msra.mxu0 0.0
    %541 = vmatprep.subr.mxu0 0.0
    %542 = vmatpush2.msra.mxu0 0.0
    %543 = vmatprep.subr.mxu0 0.0
    %544 = vmatpush2.msra.mxu0 0.0
    %545 = vmatprep.subr.mxu0 0.0
    %546 = vmatpush2.msra.mxu0 0.0
    %547 = vmatprep.subr.mxu0 0.0
    %548 = vmatpush2.msra.mxu0 0.0
    %549 = vmatprep.subr.mxu0 0.0
    %550 = vmatpush2.msra.mxu0 0.0
    %551 = vmatprep.subr.mxu0 0.0
    %552 = vmatpush2.msra.mxu0 0.0
    %553 = vmatprep.subr.mxu0 0.0
    %554 = vmatpush2.msra.mxu0 0.0
    %555 = vmatprep.subr.mxu0 0.0
    %556 = vmatpush2.msra.mxu0 0.0
    %557 = vmatprep.subr.mxu0 0.0
    %558 = vmatpush2.msra.mxu0 0.0
    %559 = vmatprep.subr.mxu0 0.0
    %560 = vmatpush2.msra.mxu0 0.0
    %561 = vmatprep.subr.mxu0 0.0
    %562 = vmatpush2.msra.mxu0 0.0
    %563 = vmatprep.subr.mxu0 0.0
    %564 = vmatpush2.msra.mxu0 0.0
    %565 = vmatprep.subr.mxu0 0.0
    %566 = vmatpush2.msra.mxu0 0.0
    %567 = vmatprep.mubr.f32.mxu0 0.0
    %568 = vmatmul.mubr.f32.gmra.mxu0 %v501
    %v569 = vpop.f32.mrf.mxu0
    %v570 = vadd.f32 %v86, %v569
    %v571 = vpop.f32.mrf.mxu0
    %572 = vdwg.mxu0
    %v573 = vxor.u32 %v570, 2147483648
    %v574 = vmul.f32 %v573, 1.442695
    %v575 = vpow.pop %v574
    %v576 = vadd.f32 %v575, 1.0
    %v577 = vrcp.pop %v576
    %v578 = vmul.f32 1.0, %v577
    %v579 = vtanh.pop %v570
    %v580 = vmul.f32 %v578, %v488
    %582 = vrot.lane.b32.xlu0 %v579, 64
    %v583 = vpop.permute.xlu0 %582
    %v585 = vmul.f32 %v578, %v583
    %587 = vrot.lane.b32.xlu0 %v585, 32
    %v588 = vpop.permute.xlu0 %587
    %v590 = vadd.f32 %v580, %v588
    %v591 = vtanh.pop %v590
    %593 = vrot.lane.b32.xlu0 %v591, 64
    %v594 = vpop.permute.xlu0 %593
    %v596 = vmul.f32 %v578, %v594
    %598 = vrot.lane.b32.xlu0 %v596, 32
    %v599 = vpop.permute.xlu0 %598
    %s601 = scalar_lea.vmem [#allocation2], 32
    %602 = vst.msk [vmem:[%s601] sm:$0xff] %vm88, %v599
    %v603 = vsel %vm88, %v599, 0
    %605 = vmatprep.subr.mxu0 0.0
    %606 = vmatpush1.msra.mxu0 0.0
    %607 = vmatprep.subr.mxu0 0.0
    %608 = vmatpush1.msra.mxu0 0.0
    %609 = vmatprep.subr.mxu0 0.0
    %610 = vmatpush1.msra.mxu0 0.0
    %611 = vmatprep.subr.mxu0 0.0
    %612 = vmatpush1.msra.mxu0 0.0
    %613 = vmatprep.subr.mxu0 0.0
    %614 = vmatpush1.msra.mxu0 0.0
    %615 = vmatprep.subr.mxu0 0.0
    %616 = vmatpush1.msra.mxu0 0.0
    %617 = vmatprep.subr.mxu0 0.0
    %618 = vmatpush1.msra.mxu0 0.0
    %619 = vmatprep.subr.mxu0 0.0
    %620 = vmatpush1.msra.mxu0 0.0
    %621 = vmatprep.subr.mxu0 0.0
    %622 = vmatpush1.msra.mxu0 0.0
    %623 = vmatprep.subr.mxu0 0.0
    %624 = vmatpush1.msra.mxu0 0.0
    %625 = vmatprep.subr.mxu0 0.0
    %626 = vmatpush1.msra.mxu0 0.0
    %627 = vmatprep.subr.mxu0 0.0
    %628 = vmatpush1.msra.mxu0 0.0
    %629 = vmatprep.subr.mxu0 0.0
    %630 = vmatpush1.msra.mxu0 %v78
    %631 = vmatprep.subr.mxu0 0.0
    %632 = vmatpush1.msra.mxu0 %v77
    %633 = vmatprep.subr.mxu0 0.0
    %634 = vmatpush1.msra.mxu0 %v76
    %635 = vmatprep.subr.mxu0 0.0
    %636 = vmatpush1.msra.mxu0 %v75
    %637 = vmatprep.subr.mxu0 0.0
    %638 = vmatpush2.msra.mxu0 0.0
    %639 = vmatprep.subr.mxu0 0.0
    %640 = vmatpush2.msra.mxu0 0.0
    %641 = vmatprep.subr.mxu0 0.0
    %642 = vmatpush2.msra.mxu0 0.0
    %643 = vmatprep.subr.mxu0 0.0
    %644 = vmatpush2.msra.mxu0 0.0
    %645 = vmatprep.subr.mxu0 0.0
    %646 = vmatpush2.msra.mxu0 0.0
    %647 = vmatprep.subr.mxu0 0.0
    %648 = vmatpush2.msra.mxu0 0.0
    %649 = vmatprep.subr.mxu0 0.0
    %650 = vmatpush2.msra.mxu0 0.0
    %651 = vmatprep.subr.mxu0 0.0
    %652 = vmatpush2.msra.mxu0 0.0
    %653 = vmatprep.subr.mxu0 0.0
    %654 = vmatpush2.msra.mxu0 0.0
    %655 = vmatprep.subr.mxu0 0.0
    %656 = vmatpush2.msra.mxu0 0.0
    %657 = vmatprep.subr.mxu0 0.0
    %658 = vmatpush2.msra.mxu0 0.0
    %659 = vmatprep.subr.mxu0 0.0
    %660 = vmatpush2.msra.mxu0 0.0
    %661 = vmatprep.subr.mxu0 0.0
    %662 = vmatpush2.msra.mxu0 0.0
    %663 = vmatprep.subr.mxu0 0.0
    %664 = vmatpush2.msra.mxu0 0.0
    %665 = vmatprep.subr.mxu0 0.0
    %666 = vmatpush2.msra.mxu0 0.0
    %667 = vmatprep.subr.mxu0 0.0
    %668 = vmatpush2.msra.mxu0 0.0
    %669 = vmatprep.mubr.f32.mxu0 0.0
    %670 = vmatmul.mubr.f32.gmra.mxu0 %v603
    %v671 = vpop.f32.mrf.mxu0
    %v672 = vadd.f32 %v86, %v671
    %v673 = vpop.f32.mrf.mxu0
    %674 = vdwg.mxu0
    %v675 = vxor.u32 %v672, 2147483648
    %v676 = vmul.f32 %v675, 1.442695
    %v677 = vpow.pop %v676
    %v678 = vadd.f32 %v677, 1.0
    %v679 = vrcp.pop %v678
    %v680 = vmul.f32 1.0, %v679
    %v681 = vtanh.pop %v672
    %v682 = vmul.f32 %v680, %v590
    %684 = vrot.lane.b32.xlu0 %v681, 64
    %v685 = vpop.permute.xlu0 %684
    %v687 = vmul.f32 %v680, %v685
    %689 = vrot.lane.b32.xlu0 %v687, 32
    %v690 = vpop.permute.xlu0 %689
    %v692 = vadd.f32 %v682, %v690
    %v693 = vtanh.pop %v692
    %695 = vrot.lane.b32.xlu0 %v693, 64
    %v696 = vpop.permute.xlu0 %695
    %v698 = vmul.f32 %v680, %v696
    %700 = vrot.lane.b32.xlu0 %v698, 32
    %v701 = vpop.permute.xlu0 %700
    %s703 = scalar_lea.vmem [#allocation2], 40
    %704 = vst.msk [vmem:[%s703] sm:$0xff] %vm88, %v701
    %v705 = vsel %vm88, %v701, 0
    %707 = vmatprep.subr.mxu0 0.0
    %708 = vmatpush1.msra.mxu0 0.0
    %709 = vmatprep.subr.mxu0 0.0
    %710 = vmatpush1.msra.mxu0 0.0
    %711 = vmatprep.subr.mxu0 0.0
    %712 = vmatpush1.msra.mxu0 0.0
    %713 = vmatprep.subr.mxu0 0.0
    %714 = vmatpush1.msra.mxu0 0.0
    %715 = vmatprep.subr.mxu0 0.0
    %716 = vmatpush1.msra.mxu0 0.0
    %717 = vmatprep.subr.mxu0 0.0
    %718 = vmatpush1.msra.mxu0 0.0
    %719 = vmatprep.subr.mxu0 0.0
    %720 = vmatpush1.msra.mxu0 0.0
    %721 = vmatprep.subr.mxu0 0.0
    %722 = vmatpush1.msra.mxu0 0.0
    %723 = vmatprep.subr.mxu0 0.0
    %724 = vmatpush1.msra.mxu0 0.0
    %725 = vmatprep.subr.mxu0 0.0
    %726 = vmatpush1.msra.mxu0 0.0
    %727 = vmatprep.subr.mxu0 0.0
    %728 = vmatpush1.msra.mxu0 0.0
    %729 = vmatprep.subr.mxu0 0.0
    %730 = vmatpush1.msra.mxu0 0.0
    %731 = vmatprep.subr.mxu0 0.0
    %732 = vmatpush1.msra.mxu0 %v78
    %733 = vmatprep.subr.mxu0 0.0
    %734 = vmatpush1.msra.mxu0 %v77
    %735 = vmatprep.subr.mxu0 0.0
    %736 = vmatpush1.msra.mxu0 %v76
    %737 = vmatprep.subr.mxu0 0.0
    %738 = vmatpush1.msra.mxu0 %v75
    %739 = vmatprep.subr.mxu0 0.0
    %740 = vmatpush2.msra.mxu0 0.0
    %741 = vmatprep.subr.mxu0 0.0
    %742 = vmatpush2.msra.mxu0 0.0
    %743 = vmatprep.subr.mxu0 0.0
    %744 = vmatpush2.msra.mxu0 0.0
    %745 = vmatprep.subr.mxu0 0.0
    %746 = vmatpush2.msra.mxu0 0.0
    %747 = vmatprep.subr.mxu0 0.0
    %748 = vmatpush2.msra.mxu0 0.0
    %749 = vmatprep.subr.mxu0 0.0
    %750 = vmatpush2.msra.mxu0 0.0
    %751 = vmatprep.subr.mxu0 0.0
    %752 = vmatpush2.msra.mxu0 0.0
    %753 = vmatprep.subr.mxu0 0.0
    %754 = vmatpush2.msra.mxu0 0.0
    %755 = vmatprep.subr.mxu0 0.0
    %756 = vmatpush2.msra.mxu0 0.0
    %757 = vmatprep.subr.mxu0 0.0
    %758 = vmatpush2.msra.mxu0 0.0
    %759 = vmatprep.subr.mxu0 0.0
    %760 = vmatpush2.msra.mxu0 0.0
    %761 = vmatprep.subr.mxu0 0.0
    %762 = vmatpush2.msra.mxu0 0.0
    %763 = vmatprep.subr.mxu0 0.0
    %764 = vmatpush2.msra.mxu0 0.0
    %765 = vmatprep.subr.mxu0 0.0
    %766 = vmatpush2.msra.mxu0 0.0
    %767 = vmatprep.subr.mxu0 0.0
    %768 = vmatpush2.msra.mxu0 0.0
    %769 = vmatprep.subr.mxu0 0.0
    %770 = vmatpush2.msra.mxu0 0.0
    %771 = vmatprep.mubr.f32.mxu0 0.0
    %772 = vmatmul.mubr.f32.gmra.mxu0 %v705
    %v773 = vpop.f32.mrf.mxu0
    %v774 = vadd.f32 %v86, %v773
    %v775 = vpop.f32.mrf.mxu0
    %776 = vdwg.mxu0
    %v777 = vxor.u32 %v774, 2147483648
    %v778 = vmul.f32 %v777, 1.442695
    %v779 = vpow.pop %v778
    %v780 = vadd.f32 %v779, 1.0
    %v781 = vrcp.pop %v780
    %v782 = vmul.f32 1.0, %v781
    %v783 = vtanh.pop %v774
    %v784 = vmul.f32 %v782, %v692
    %786 = vrot.lane.b32.xlu0 %v783, 64
    %v787 = vpop.permute.xlu0 %786
    %v789 = vmul.f32 %v782, %v787
    %791 = vrot.lane.b32.xlu0 %v789, 32
    %v792 = vpop.permute.xlu0 %791
    %v794 = vadd.f32 %v784, %v792
    %v795 = vtanh.pop %v794
    %797 = vrot.lane.b32.xlu0 %v795, 64
    %v798 = vpop.permute.xlu0 %797
    %v800 = vmul.f32 %v782, %v798
    %802 = vrot.lane.b32.xlu0 %v800, 32
    %v803 = vpop.permute.xlu0 %802
    %s805 = scalar_lea.vmem [#allocation2], 48
    %806 = vst.msk [vmem:[%s805] sm:$0xff] %vm88, %v803
    %v807 = vsel %vm88, %v803, 0
    %809 = vmatprep.subr.mxu0 0.0
    %810 = vmatpush1.msra.mxu0 0.0
    %811 = vmatprep.subr.mxu0 0.0
    %812 = vmatpush1.msra.mxu0 0.0
    %813 = vmatprep.subr.mxu0 0.0
    %814 = vmatpush1.msra.mxu0 0.0
    %815 = vmatprep.subr.mxu0 0.0
    %816 = vmatpush1.msra.mxu0 0.0
    %817 = vmatprep.subr.mxu0 0.0
    %818 = vmatpush1.msra.mxu0 0.0
    %819 = vmatprep.subr.mxu0 0.0
    %820 = vmatpush1.msra.mxu0 0.0
    %821 = vmatprep.subr.mxu0 0.0
    %822 = vmatpush1.msra.mxu0 0.0
    %823 = vmatprep.subr.mxu0 0.0
    %824 = vmatpush1.msra.mxu0 0.0
    %825 = vmatprep.subr.mxu0 0.0
    %826 = vmatpush1.msra.mxu0 0.0
    %827 = vmatprep.subr.mxu0 0.0
    %828 = vmatpush1.msra.mxu0 0.0
    %829 = vmatprep.subr.mxu0 0.0
    %830 = vmatpush1.msra.mxu0 0.0
    %831 = vmatprep.subr.mxu0 0.0
    %832 = vmatpush1.msra.mxu0 0.0
    %833 = vmatprep.subr.mxu0 0.0
    %834 = vmatpush1.msra.mxu0 %v78
    %835 = vmatprep.subr.mxu0 0.0
    %836 = vmatpush1.msra.mxu0 %v77
    %837 = vmatprep.subr.mxu0 0.0
    %838 = vmatpush1.msra.mxu0 %v76
    %839 = vmatprep.subr.mxu0 0.0
    %840 = vmatpush1.msra.mxu0 %v75
    %841 = vmatprep.subr.mxu0 0.0
    %842 = vmatpush2.msra.mxu0 0.0
    %843 = vmatprep.subr.mxu0 0.0
    %844 = vmatpush2.msra.mxu0 0.0
    %845 = vmatprep.subr.mxu0 0.0
    %846 = vmatpush2.msra.mxu0 0.0
    %847 = vmatprep.subr.mxu0 0.0
    %848 = vmatpush2.msra.mxu0 0.0
    %849 = vmatprep.subr.mxu0 0.0
    %850 = vmatpush2.msra.mxu0 0.0
    %851 = vmatprep.subr.mxu0 0.0
    %852 = vmatpush2.msra.mxu0 0.0
    %853 = vmatprep.subr.mxu0 0.0
    %854 = vmatpush2.msra.mxu0 0.0
    %855 = vmatprep.subr.mxu0 0.0
    %856 = vmatpush2.msra.mxu0 0.0
    %857 = vmatprep.subr.mxu0 0.0
    %858 = vmatpush2.msra.mxu0 0.0
    %859 = vmatprep.subr.mxu0 0.0
    %860 = vmatpush2.msra.mxu0 0.0
    %861 = vmatprep.subr.mxu0 0.0
    %862 = vmatpush2.msra.mxu0 0.0
    %863 = vmatprep.subr.mxu0 0.0
    %864 = vmatpush2.msra.mxu0 0.0
    %865 = vmatprep.subr.mxu0 0.0
    %866 = vmatpush2.msra.mxu0 0.0
    %867 = vmatprep.subr.mxu0 0.0
    %868 = vmatpush2.msra.mxu0 0.0
    %869 = vmatprep.subr.mxu0 0.0
    %870 = vmatpush2.msra.mxu0 0.0
    %871 = vmatprep.subr.mxu0 0.0
    %872 = vmatpush2.msra.mxu0 0.0
    %873 = vmatprep.mubr.f32.mxu0 0.0
    %874 = vmatmul.mubr.f32.gmra.mxu0 %v807
    %v875 = vpop.f32.mrf.mxu0
    %v876 = vadd.f32 %v86, %v875
    %v877 = vpop.f32.mrf.mxu0
    %878 = vdwg.mxu0
    %v879 = vxor.u32 %v876, 2147483648
    %v880 = vmul.f32 %v879, 1.442695
    %v881 = vpow.pop %v880
    %v882 = vadd.f32 %v881, 1.0
    %v883 = vrcp.pop %v882
    %v884 = vmul.f32 1.0, %v883
    %v885 = vtanh.pop %v876
    %v886 = vmul.f32 %v884, %v794
    %888 = vrot.lane.b32.xlu0 %v885, 64
    %v889 = vpop.permute.xlu0 %888
    %v891 = vmul.f32 %v884, %v889
    %893 = vrot.lane.b32.xlu0 %v891, 32
    %v894 = vpop.permute.xlu0 %893
    %v896 = vadd.f32 %v886, %v894
    %v897 = vtanh.pop %v896
    %899 = vrot.lane.b32.xlu0 %v897, 64
    %v900 = vpop.permute.xlu0 %899
    %v902 = vmul.f32 %v884, %v900
    %904 = vrot.lane.b32.xlu0 %v902, 32
    %v905 = vpop.permute.xlu0 %904
    %s907 = scalar_lea.vmem [#allocation2], 56
    %908 = vst.msk [vmem:[%s907] sm:$0xff] %vm88, %v905
    %v909 = vld [vmem:[#allocation2] sm:$0xff]
    %v910 = vld [vmem:[#allocation2 + $0x8] sm:$0xff]
    %v911 = vld [vmem:[#allocation2 + $0x10] sm:$0xff]
    %v912 = vld [vmem:[#allocation2 + $0x18] sm:$0xff]
    %v913 = vld [vmem:[#allocation2 + $0x20] sm:$0xff]
    %v914 = vld [vmem:[#allocation2 + $0x28] sm:$0xff]
    %v915 = vld [vmem:[#allocation2 + $0x30] sm:$0xff]
    %v916 = vld [vmem:[#allocation2 + $0x38] sm:$0xff]
    %v917 = vld [vmem:[#allocation9] sm:$0xff]
    %v918 = vld [vmem:[#allocation9 + $0x8] sm:$0xff]
    %v919 = vld [vmem:[#allocation9 + $0x10] sm:$0xff]
    %v920 = vld [vmem:[#allocation9 + $0x18] sm:$0xff]
    %v921 = vld [vmem:[%s5] sm:$0x1]
    %v923 = vlaneseq
    %v924 = vshrl.u32 %v923, 7
    %v925 = vsub.s32 0, %v924
    %v926 = vrot.slane %v921, %v925
    %v929 = vsel %vm88, %v909, 0
    %v932 = vsel %vm88, %v910, 0
    %v935 = vsel %vm88, %v911, 0
    %v938 = vsel %vm88, %v912, 0
    %v941 = vsel %vm88, %v913, 0
    %v944 = vsel %vm88, %v914, 0
    %v947 = vsel %vm88, %v915, 0
    %v950 = vsel %vm88, %v916, 0
    %952 = vmatprep.subr.mxu0 0.0
    %953 = vmatpush1.msra.mxu0 0.0
    %954 = vmatprep.subr.mxu0 0.0
    %955 = vmatpush1.msra.mxu0 0.0
    %956 = vmatprep.subr.mxu0 0.0
    %957 = vmatpush1.msra.mxu0 0.0
    %958 = vmatprep.subr.mxu0 0.0
    %959 = vmatpush1.msra.mxu0 0.0
    %960 = vmatprep.subr.mxu0 0.0
    %961 = vmatpush1.msra.mxu0 0.0
    %962 = vmatprep.subr.mxu0 0.0
    %963 = vmatpush1.msra.mxu0 0.0
    %964 = vmatprep.subr.mxu0 0.0
    %965 = vmatpush1.msra.mxu0 0.0
    %966 = vmatprep.subr.mxu0 0.0
    %967 = vmatpush1.msra.mxu0 0.0
    %968 = vmatprep.subr.mxu0 0.0
    %969 = vmatpush1.msra.mxu0 0.0
    %970 = vmatprep.subr.mxu0 0.0
    %971 = vmatpush1.msra.mxu0 0.0
    %972 = vmatprep.subr.mxu0 0.0
    %973 = vmatpush1.msra.mxu0 0.0
    %974 = vmatprep.subr.mxu0 0.0
    %975 = vmatpush1.msra.mxu0 0.0
    %976 = vmatprep.subr.mxu0 0.0
    %977 = vmatpush1.msra.mxu0 %v920
    %978 = vmatprep.subr.mxu0 0.0
    %979 = vmatpush1.msra.mxu0 %v919
    %980 = vmatprep.subr.mxu0 0.0
    %981 = vmatpush1.msra.mxu0 %v918
    %982 = vmatprep.subr.mxu0 0.0
    %983 = vmatpush1.msra.mxu0 %v917
    %984 = vmatprep.subr.mxu0 0.0
    %985 = vmatpush2.msra.mxu0 0.0
    %986 = vmatprep.subr.mxu0 0.0
    %987 = vmatpush2.msra.mxu0 0.0
    %988 = vmatprep.subr.mxu0 0.0
    %989 = vmatpush2.msra.mxu0 0.0
    %990 = vmatprep.subr.mxu0 0.0
    %991 = vmatpush2.msra.mxu0 0.0
    %992 = vmatprep.subr.mxu0 0.0
    %993 = vmatpush2.msra.mxu0 0.0
    %994 = vmatprep.subr.mxu0 0.0
    %995 = vmatpush2.msra.mxu0 0.0
    %996 = vmatprep.subr.mxu0 0.0
    %997 = vmatpush2.msra.mxu0 0.0
    %998 = vmatprep.subr.mxu0 0.0
    %999 = vmatpush2.msra.mxu0 0.0
    %1000 = vmatprep.subr.mxu0 0.0
    %1001 = vmatpush2.msra.mxu0 0.0
    %1002 = vmatprep.subr.mxu0 0.0
    %1003 = vmatpush2.msra.mxu0 0.0
    %1004 = vmatprep.subr.mxu0 0.0
    %1005 = vmatpush2.msra.mxu0 0.0
    %1006 = vmatprep.subr.mxu0 0.0
    %1007 = vmatpush2.msra.mxu0 0.0
    %1008 = vmatprep.subr.mxu0 0.0
    %1009 = vmatpush2.msra.mxu0 0.0
    %1010 = vmatprep.subr.mxu0 0.0
    %1011 = vmatpush2.msra.mxu0 0.0
    %1012 = vmatprep.subr.mxu0 0.0
    %1013 = vmatpush2.msra.mxu0 0.0
    %1014 = vmatprep.subr.mxu0 0.0
    %1015 = vmatpush2.msra.mxu0 0.0
    %1016 = vmatprep.mubr.f32.mxu0 0.0
    %1017 = vmatmul.mubr.f32.gmra.mxu0 %v929
    %v1018 = vpop.f32.mrf.mxu0
    %v1019 = vadd.f32 %v926, %v1018
    %v1020 = vpop.f32.mrf.mxu0
    %1021 = vmatprep.mubr.f32.mxu0 0.0
    %1022 = vmatmul.mubr.f32.gmra.mxu0 %v932
    %v1023 = vpop.f32.mrf.mxu0
    %v1024 = vadd.f32 %v926, %v1023
    %v1025 = vpop.f32.mrf.mxu0
    %1026 = vmatprep.mubr.f32.mxu0 0.0
    %1027 = vmatmul.mubr.f32.gmra.mxu0 %v935
    %v1028 = vpop.f32.mrf.mxu0
    %v1029 = vadd.f32 %v926, %v1028
    %v1030 = vpop.f32.mrf.mxu0
    %1031 = vmatprep.mubr.f32.mxu0 0.0
    %1032 = vmatmul.mubr.f32.gmra.mxu0 %v938
    %v1033 = vpop.f32.mrf.mxu0
    %v1034 = vadd.f32 %v926, %v1033
    %v1035 = vpop.f32.mrf.mxu0
    %1036 = vmatprep.mubr.f32.mxu0 0.0
    %1037 = vmatmul.mubr.f32.gmra.mxu0 %v941
    %v1038 = vpop.f32.mrf.mxu0
    %v1039 = vadd.f32 %v926, %v1038
    %v1040 = vpop.f32.mrf.mxu0
    %1041 = vmatprep.mubr.f32.mxu0 0.0
    %1042 = vmatmul.mubr.f32.gmra.mxu0 %v944
    %v1043 = vpop.f32.mrf.mxu0
    %v1044 = vadd.f32 %v926, %v1043
    %v1045 = vpop.f32.mrf.mxu0
    %1046 = vmatprep.mubr.f32.mxu0 0.0
    %1047 = vmatmul.mubr.f32.gmra.mxu0 %v947
    %v1048 = vpop.f32.mrf.mxu0
    %v1049 = vadd.f32 %v926, %v1048
    %v1050 = vpop.f32.mrf.mxu0
    %1051 = vmatprep.mubr.f32.mxu0 0.0
    %1052 = vmatmul.mubr.f32.gmra.mxu0 %v950
    %v1053 = vpop.f32.mrf.mxu0
    %v1054 = vadd.f32 %v926, %v1053
    %v1055 = vpop.f32.mrf.mxu0
    %1056 = vdwg.mxu0
    %1057 = vst [vmem:[#allocation11] sm:$0xff] %v1019
    %1058 = vst [vmem:[#allocation11 + $0x8] sm:$0xff] %v1024
    %1059 = vst [vmem:[#allocation11 + $0x10] sm:$0xff] %v1029
    %1060 = vst [vmem:[#allocation11 + $0x18] sm:$0xff] %v1034
    %1061 = vst [vmem:[#allocation11 + $0x20] sm:$0xff] %v1039
    %1062 = vst [vmem:[#allocation11 + $0x28] sm:$0xff] %v1044
    %1063 = vst [vmem:[#allocation11 + $0x30] sm:$0xff] %v1049
    %1064 = vst [vmem:[#allocation11 + $0x38] sm:$0xff] %v1054
    // Predicated region
    $region42: #{tpu_custom_call.1} parent=1 // pred_check
      _
    $region43: #{tpu_custom_call.1} parent=1 // pred_check_branch
      %1066 = sbr.rel (0) target = $region45
    $region44: #{tpu_custom_call.1} parent=1 // pred_region
      %s1068 = ssub.s32 1024, 1024
      %1069 = vsyncadd [#allocation5], %s1068
      %s1070 = sshll.u32 [#allocation11], 4
      %s1071 = int_to_ptr.vmem [resolvable:$true] %s1070
      %1076 = dma.vmem_to_hbm [thread:$0]  %s1071, 1024, %s6, [#allocation5], 128, 128, 8
    $region45: #{tpu_custom_call.1} parent=1 // pred_fallthru
      _
    // Predicated region
    $region46: #{tpu_custom_call.1} parent=1 // pred_check
      _
    $region47: #{tpu_custom_call.1} parent=1 // pred_check_branch
      %1078 = sbr.rel (0) target = $region49
    $region48: #{tpu_custom_call.1} parent=1 // pred_region
      %1079 = dma.done [#allocation5], 1024
    $region49: #{tpu_custom_call.1} parent=1 // pred_fallthru
      _
    %1080 = vsyncpa [#allocation4], 1
    %1081 = vsyncpa [#allocation7], 1
    %1082 = vsyncpa [#allocation10], 1
    %1083 = vsyncpa [#allocation5], 1

</llo_original>
